<compile_context>
chip_gen: v7x
topology: tpu7x:2x2x1
jax: 0.10.0
libtpu: 0.0.40
codegen_flags: <defaults>
</compile_context>

<pallas_src>
import jax
import jax.numpy as jnp
from jax.experimental import pallas as pl
from jax.experimental.pallas import tpu as pltpu


def _round_up(x, m):
    return (x + m - 1) // m * m


def _sees_decoder_kernel(x_ref, w1_ref, b1_ref, w2_ref, b2_ref, out_ref, acc_ref):
    """Grid step (i: batch tile, j: output-col tile, s: contraction over seq).

    x_ref  : (bm, 2H)  compute dtype  -- src[:, s, :] for this batch tile
    w1_ref : (2H, H)   compute dtype
    b1_ref : (1, H)    f32
    w2_ref : (H, tn)   compute dtype  -- rows s*H:(s+1)*H of stacked futureFC W^T
    b2_ref : (1, tn)   f32
    out_ref: (bm, tn)  output dtype   -- resident across s (accumulator pattern)
    acc_ref: (bm, tn)  f32 scratch
    """
    s = pl.program_id(2)

    # Fold the futureFC bias into the accumulator init (no separate add pass).
    @pl.when(s == 0)
    def _init():
        acc_ref[...] = jnp.broadcast_to(
            b2_ref[...].astype(jnp.float32), acc_ref.shape)

    # First matmul for this sequence position, 2-D and lane-aligned:
    #   h_s = src[:, s, :] @ W1 + b1          (bm, H), f32 accumulation on MXU
    h = jnp.dot(x_ref[...], w1_ref[...],
                preferred_element_type=jnp.float32) + b1_ref[...]

    # One contraction slice of the stacked futureFC matmul:
    #   acc += h_s @ W2[s*H:(s+1)*H, :]
    acc_ref[...] += jnp.dot(h.astype(w2_ref.dtype), w2_ref[...],
                            preferred_element_type=jnp.float32)

    @pl.when(s == pl.num_programs(2) - 1)
    def _finalize():
        out_ref[...] = acc_ref[...].astype(out_ref.dtype)


def sees_decoder_forward(src, w1, b1, w2, b2, *, compute_dtype=jnp.float32):
    """src: (B, S, 2H); w1: (2H, H); b1: (H,); w2: (S*H, S*O); b2: (S*O,)."""
    B, S, two_H = src.shape
    H = w1.shape[1]
    assert two_H == 2 * H
    N = w2.shape[1]                        # = S * out_dim

    # ----- tile sizes ------------------------------------------------------
    bm = 128 if B >= 128 else _round_up(B, 8)      # M tile: >= one sublane group
    B_pad = _round_up(B, bm)
    N_pad = _round_up(N, 128)                      # lane-dense output columns
    tn = 128
    for cand in (512, 256, 128):
        if N_pad % cand == 0:
            tn = cand
            break

    # ----- wrapper-side layout plumbing (plain XLA, outside the kernel) ----
    x = src
    if B_pad != B:
        x = jnp.pad(x, ((0, B_pad - B), (0, 0), (0, 0)))
    x = jnp.transpose(x, (1, 0, 2)).astype(compute_dtype)       # (S, B_pad, 2H)

    w1c = w1.astype(compute_dtype)                               # (2H, H)
    b1c = b1.reshape(1, H).astype(jnp.float32)                   # (1, H)

    w2p, b2p = w2, b2
    if N_pad != N:
        w2p = jnp.pad(w2p, ((0, 0), (0, N_pad - N)))
        b2p = jnp.pad(b2p, ((0, N_pad - N),))
    w2c = w2p.reshape(S, H, N_pad).astype(compute_dtype)         # (S, H, N_pad)
    b2c = b2p.reshape(1, N_pad).astype(jnp.float32)              # (1, N_pad)

    grid = (B_pad // bm, N_pad // tn, S)

    # Rough VMEM budget: double-buffered inputs + double-buffered output + acc.
    isz = jnp.dtype(compute_dtype).itemsize
    osz = jnp.dtype(src.dtype).itemsize
    vmem_est = (2 * (bm * two_H * isz + two_H * H * isz + H * 4
                     + H * tn * isz + tn * 4)
                + 2 * bm * tn * osz + bm * tn * 4)
    vmem_limit = int(min(max(2 * vmem_est, 16 * 2 ** 20), 32 * 2 ** 20))

    out_padded = pl.pallas_call(
        _sees_decoder_kernel,
        out_shape=jax.ShapeDtypeStruct((B_pad, N_pad), src.dtype),
        grid_spec=pltpu.PrefetchScalarGridSpec(
            num_scalar_prefetch=0,
            grid=grid,
            in_specs=[
                # src (S, B_pad, 2H): pick sequence position s, batch tile i.
                pl.BlockSpec((pl.Squeezed(), bm, two_H), lambda i, j, s: (s, i, 0)),
                # w1 (2H, H): whole array, constant across the grid.
                pl.BlockSpec((two_H, H), lambda i, j, s: (0, 0)),
                # b1 (1, H): constant.
                pl.BlockSpec((1, H), lambda i, j, s: (0, 0)),
                # w2 (S, H, N_pad): row-chunk s, column tile j (independent of i).
                pl.BlockSpec((pl.Squeezed(), H, tn), lambda i, j, s: (s, 0, j)),
                # b2 (1, N_pad): column tile j.
                pl.BlockSpec((1, tn), lambda i, j, s: (0, j)),
            ],
            out_specs=pl.BlockSpec((bm, tn), lambda i, j, s: (i, j)),
            scratch_shapes=[pltpu.VMEM((bm, tn), jnp.float32)],
        ),
        compiler_params=pltpu.CompilerParams(
            dimension_semantics=("parallel", "parallel", "arbitrary"),
            vmem_limit_bytes=vmem_limit,
        ),
    )(x, w1c, b1c, w2c, b2c)

    return out_padded[:B, :N]


def init_params(key, hid_dim, out_dim, seq_len):
    """Deterministic synthetic parameters (shapes match the nn.Module __init__)."""
    k1, k2, k3, k4 = jax.random.split(key, 4)
    # FC: Linear(2H -> H); torch stores (H, 2H), we keep the transpose (2H, H).
    w1 = jax.random.normal(k1, (2 * hid_dim, hid_dim), jnp.float32) * 0.05
    b1 = jax.random.normal(k2, (hid_dim,), jnp.float32) * 0.05
    # futureFC: seq_len x Linear(S*H -> out_dim); stack W_i^T along output axis
    # (equivalent to torch.cat(out, dim=1)).
    w2_stack = jax.random.normal(
        k3, (seq_len, seq_len * hid_dim, out_dim), jnp.float32) * 0.05
    b2_stack = jax.random.normal(k4, (seq_len, out_dim), jnp.float32) * 0.05
    w2 = jnp.concatenate([w2_stack[i] for i in range(seq_len)], axis=1)  # (S*H, S*O)
    b2 = jnp.concatenate([b2_stack[i] for i in range(seq_len)], axis=0)  # (S*O,)
    return w1, b1, w2, b2


def reference_forward(src, w1, b1, w2, b2):
    """Pure-JAX reference mirroring the PyTorch forward."""
    B, S, _ = src.shape
    h = jnp.einsum('bsk,kh->bsh', src, w1) + b1
    h = h.reshape(B, S * h.shape[-1])
    return h @ w2 + b2


if __name__ == "__main__":
    B, seq_len, hid_dim, out_dim = 2, 8, 32, 4

    key = jax.random.PRNGKey(0)
    k_x, k_p = jax.random.split(key)
    src = jax.random.normal(k_x, (B, seq_len, 2 * hid_dim), jnp.float32)
    w1, b1, w2, b2 = init_params(k_p, hid_dim, out_dim, seq_len)

    ref = reference_forward(src, w1, b1, w2, b2)

    # f32 path — exact check against the reference.
    out = sees_decoder_forward(src, w1, b1, w2, b2, compute_dtype=jnp.float32)
    out = jax.block_until_ready(out)
    assert out.shape == (B, seq_len * out_dim)
    assert jnp.allclose(out, ref, atol=1e-4, rtol=1e-4)

    # bf16 weight/activation path (full-rate MXU on v6e/v7x) — relaxed tolerance,
    # f32 accumulation is kept inside the kernel.
    out_bf16 = sees_decoder_forward(src, w1, b1, w2, b2, compute_dtype=jnp.bfloat16)
    out_bf16 = jax.block_until_ready(out_bf16)
    assert out_bf16.shape == (B, seq_len * out_dim)
    assert jnp.allclose(out_bf16, ref, atol=5e-2, rtol=5e-2)

    print("KERNEL_OK")
</pallas_src>

<mosaic_0001>
module attributes {stable_mosaic.version = 11 : i64} {
  func.func @_sees_decoder_kernel(%arg0: i32, %arg1: i32, %arg2: i32, %arg3: memref<1x8x64xf32, #tpu.memory_space<vmem>>, %arg4: memref<64x32xf32, #tpu.memory_space<vmem>>, %arg5: memref<1x32xf32, #tpu.memory_space<vmem>>, %arg6: memref<1x32x128xf32, #tpu.memory_space<vmem>>, %arg7: memref<1x128xf32, #tpu.memory_space<vmem>>, %arg8: memref<8x128xf32, #tpu.memory_space<vmem>>, %arg9: memref<8x128xf32, #tpu.memory_space<vmem>>) attributes {dimension_semantics = [#tpu.dimension_semantics<parallel>, #tpu.dimension_semantics<parallel>, #tpu.dimension_semantics<arbitrary>], iteration_bounds = array<i64: 1, 1, 8>, scalar_prefetch = 0 : i64, scratch_operands = 1 : i64, tpu.core_type = #tpu.core_type<tc>, window_params = [{transform_indices = @transform_0, window_bounds = array<i64: 1, 8, 64>}, {pipeline_mode = #tpu.pipeline_mode<synchronous>, transform_indices = @transform_1, window_bounds = array<i64: 64, 32>}, {pipeline_mode = #tpu.pipeline_mode<synchronous>, transform_indices = @transform_2, window_bounds = array<i64: 1, 32>}, {transform_indices = @transform_3, window_bounds = array<i64: 1, 32, 128>}, {transform_indices = @transform_4, window_bounds = array<i64: 1, 128>}, {transform_indices = @transform_5, window_bounds = array<i64: 8, 128>}]} {
    %c0_i32 = arith.constant 0 : i32
    %0 = arith.cmpi eq, %arg2, %c0_i32 : i32
    %1 = arith.extui %0 : i1 to i32
    %c0_i32_0 = arith.constant 0 : i32
    %2 = arith.cmpi ne, %1, %c0_i32_0 : i32
    scf.if %2 {
      %c0_16 = arith.constant 0 : index
      %c0_17 = arith.constant 0 : index
      %19 = vector.load %arg7[%c0_16, %c0_17] : memref<1x128xf32, #tpu.memory_space<vmem>>, vector<1x128xf32>
      %20 = vector.shape_cast %19 : vector<1x128xf32> to vector<1x128xf32>
      %21 = vector.broadcast %20 : vector<1x128xf32> to vector<8x128xf32>
      %c0_18 = arith.constant 0 : index
      %c0_19 = arith.constant 0 : index
      %22 = vector.load %arg9[%c0_18, %c0_19] : memref<8x128xf32, #tpu.memory_space<vmem>>, vector<8x128xf32>
      tpu.vector_store %arg9[%c0_18, %c0_19], %21 {strides = array<i32>} : memref<8x128xf32, #tpu.memory_space<vmem>>, vector<8x128xf32>,
    } else {
    }
    %c0 = arith.constant 0 : index
    %c0_1 = arith.constant 0 : index
    %c0_2 = arith.constant 0 : index
    %3 = vector.load %arg3[%c0, %c0_1, %c0_2] : memref<1x8x64xf32, #tpu.memory_space<vmem>>, vector<1x8x64xf32>
    %4 = vector.shape_cast %3 : vector<1x8x64xf32> to vector<8x64xf32>
    %c0_3 = arith.constant 0 : index
    %c0_4 = arith.constant 0 : index
    %5 = vector.load %arg4[%c0_3, %c0_4] : memref<64x32xf32, #tpu.memory_space<vmem>>, vector<64x32xf32>
    %cst = arith.constant dense<0.000000e+00> : vector<8x32xf32>
    %6 = tpu.matmul %4, %5, %cst {dimension_numbers = #tpu.dot_dimension_numbers<[1], [0], [0], [1], [0, 0, 1, 1], [], []>} : vector<8x64xf32>, vector<64x32xf32>, vector<8x32xf32> -> vector<8x32xf32>
    %c0_5 = arith.constant 0 : index
    %c0_6 = arith.constant 0 : index
    %7 = vector.load %arg5[%c0_5, %c0_6] : memref<1x32xf32, #tpu.memory_space<vmem>>, vector<1x32xf32>
    %8 = vector.broadcast %7 : vector<1x32xf32> to vector<8x32xf32>
    %9 = arith.addf %6, %8 : vector<8x32xf32>
    %c0_7 = arith.constant 0 : index
    %c0_8 = arith.constant 0 : index
    %10 = vector.load %arg9[%c0_7, %c0_8] : memref<8x128xf32, #tpu.memory_space<vmem>>, vector<8x128xf32>
    %c0_9 = arith.constant 0 : index
    %c0_10 = arith.constant 0 : index
    %c0_11 = arith.constant 0 : index
    %11 = vector.load %arg6[%c0_9, %c0_10, %c0_11] : memref<1x32x128xf32, #tpu.memory_space<vmem>>, vector<1x32x128xf32>
    %12 = vector.shape_cast %11 : vector<1x32x128xf32> to vector<32x128xf32>
    %cst_12 = arith.constant dense<0.000000e+00> : vector<8x128xf32>
    %13 = tpu.matmul %9, %12, %cst_12 {dimension_numbers = #tpu.dot_dimension_numbers<[1], [0], [0], [1], [0, 0, 1, 1], [], []>} : vector<8x32xf32>, vector<32x128xf32>, vector<8x128xf32> -> vector<8x128xf32>
    %14 = arith.addf %10, %13 : vector<8x128xf32>
    %c0_13 = arith.constant 0 : index
    %c0_14 = arith.constant 0 : index
    %15 = vector.load %arg9[%c0_13, %c0_14] : memref<8x128xf32, #tpu.memory_space<vmem>>, vector<8x128xf32>
    tpu.vector_store %arg9[%c0_13, %c0_14], %14 {strides = array<i32>} : memref<8x128xf32, #tpu.memory_space<vmem>>, vector<8x128xf32>,
    %c7_i32 = arith.constant 7 : i32
    %16 = arith.cmpi eq, %arg2, %c7_i32 : i32
    %17 = arith.extui %16 : i1 to i32
    %c0_i32_15 = arith.constant 0 : i32
    %18 = arith.cmpi ne, %17, %c0_i32_15 : i32
    scf.if %18 {
      %c0_16 = arith.constant 0 : index
      %c0_17 = arith.constant 0 : index
      %19 = vector.load %arg9[%c0_16, %c0_17] : memref<8x128xf32, #tpu.memory_space<vmem>>, vector<8x128xf32>
      %c0_18 = arith.constant 0 : index
      %c0_19 = arith.constant 0 : index
      %20 = vector.load %arg8[%c0_18, %c0_19] : memref<8x128xf32, #tpu.memory_space<vmem>>, vector<8x128xf32>
      tpu.vector_store %arg8[%c0_18, %c0_19], %19 {strides = array<i32>} : memref<8x128xf32, #tpu.memory_space<vmem>>, vector<8x128xf32>,
    } else {
    }
    return
  }
  func.func @transform_0(%arg0: i32, %arg1: i32, %arg2: i32) -> (i32, i32, i32) {
    %c0_i32 = arith.constant 0 : i32
    %c0_i32_0 = arith.constant 0 : i32
    return %arg2, %arg0, %c0_i32 : i32, i32, i32
  }
  func.func @transform_1(%arg0: i32, %arg1: i32, %arg2: i32) -> (i32, i32) {
    %c0_i32 = arith.constant 0 : i32
    %c0_i32_0 = arith.constant 0 : i32
    %c0_i32_1 = arith.constant 0 : i32
    return %c0_i32, %c0_i32_0 : i32, i32
  }
  func.func @transform_2(%arg0: i32, %arg1: i32, %arg2: i32) -> (i32, i32) {
    %c0_i32 = arith.constant 0 : i32
    %c0_i32_0 = arith.constant 0 : i32
    %c0_i32_1 = arith.constant 0 : i32
    return %c0_i32, %c0_i32_0 : i32, i32
  }
  func.func @transform_3(%arg0: i32, %arg1: i32, %arg2: i32) -> (i32, i32, i32) {
    %c0_i32 = arith.constant 0 : i32
    %c0_i32_0 = arith.constant 0 : i32
    return %arg2, %c0_i32, %arg1 : i32, i32, i32
  }
  func.func @transform_4(%arg0: i32, %arg1: i32, %arg2: i32) -> (i32, i32) {
    %c0_i32 = arith.constant 0 : i32
    %c0_i32_0 = arith.constant 0 : i32
    return %c0_i32, %arg1 : i32, i32
  }
  func.func @transform_5(%arg0: i32, %arg1: i32, %arg2: i32) -> (i32, i32) {
    %c0_i32 = arith.constant 0 : i32
    return %arg0, %arg1 : i32, i32
  }
}

</mosaic_0001>

<llo_original>
// kernel: tpu_custom_call.1
$region0: #{tpu_custom_call.1}
  #allocation0 [shape = 'u32[]', space=smem, size = 0x4, offset = 0x4, fixed_abs, tag = 'smem constant byte address 0x4 - core index']
  #allocation1 [shape = 'u32[144,128]{1,0:T(1,128)}', space=vmem, size = 0x12000, scoped, tag = 'internal scratch']
  #allocation2 [shape = 'f32[8,128]{1,0:T(8,128)}', space=vmem, size = 0x1000, scoped, tag = 'scratch operand']
  %s0 = inlined_call_operand.vmem [shape: f32[8,8,64], index: 0, kind: input, shape index: {}]
  %s1 = inlined_call_operand.vmem [shape: f32[64,32], index: 1, kind: input, shape index: {}]
  %s2 = inlined_call_operand.vmem [shape: f32[1,32], index: 2, kind: input, shape index: {}]
  %s3 = inlined_call_operand.hbm [shape: f32[8,32,128], index: 3, kind: input, shape index: {}]
  %s4 = inlined_call_operand.vmem [shape: f32[1,128], index: 4, kind: input, shape index: {}]
  %s5 = inlined_call_operand.hbm [shape: f32[8,128], index: 5, kind: output, shape index: {}]
  %s6 = sld [smem:[#allocation0]]
  $region65: #{tpu_custom_call.1} parent=0
    _
  %s8 = ssub.s32 1, %s6
  %s9 = scalar_select 0, %s8, %s6
  $region1: #{tpu_custom_call.1} parent=0
    #allocation3 [shape = 'u8[32768]{0}', space=vmem, size = 0x8000, scoped, tag = 'input window, operand 3']
    #allocation4 [shape = 's32[2]{0}', space=sflag, size = 0x8, scoped, tag = 'scoped memory for tpu_custom_call.1']
    #allocation5 [shape = 's32[2]{0}', space=sflag, size = 0x8, scoped, tag = 'scoped memory for tpu_custom_call.1']
    #allocation6 [shape = 'u8[4096]{0}', space=vmem, size = 0x1000, scoped, tag = 'output window, operand 0, single buffered']
    %10 = vsyncpa [#allocation4], 0
    %s11 = scalar_lea.sflag [#allocation4], 1
    %12 = vsyncpa %s11, 0
    %13 = vsyncpa [#allocation5], 0
    loop: start=0, step=1, limit=10
    $region2: #{tpu_custom_call.1} parent=1 // loop_pre_header
      _
    $region3: #{tpu_custom_call.1} parent=1 // loop_header
      %s15 = sphi 0, %s19
      %p16 = scmp.ge.s32.totalorder %s15, 10
      %s22 = sphi 0, %s41
      %s23 = sphi 0, %s37
      %s24 = sphi 0, %s33
      %s25 = sphi 0, %s22
      %s26 = sphi 0, %s23
      %s27 = sphi 0, %s24
      %s28 = sphi 0, %s25
      %s29 = sphi 0, %s26
      %s30 = sphi 0, %s27
      %s46 = sphi 0, %s48
      %s49 = sphi 0, %s46
      %s50 = sphi 0, %s49
      %s66 = sphi 0, %s50
      %s70 = sphi 0, %s70
      %s72 = sphi 0, %s70
      %s73 = sphi 0, %s72
      %s87 = sphi 0, %s73
      %s91 = sphi 0, %s91
      %s93 = sphi 0, %s91
      %s94 = sphi 0, %s93
      %s108 = sphi 0, %s94
      %s116 = sphi 0, %s118
      %s119 = sphi 0, %s116
      %s120 = sphi 0, %s119
      %s136 = sphi 0, %s120
      %s142 = sphi 0, %s144
      %s145 = sphi 0, %s142
      %s146 = sphi 0, %s145
      %s162 = sphi 0, %s146
      %s170 = sphi 0, %s172
      %s173 = sphi 0, %s170
      %s174 = sphi 0, %s173
      %s190 = sphi 0, %s174
    $region4: #{tpu_custom_call.1} parent=1 // loop_header_branch
      %18 = sbr.rel (%p16) target = $region8
    $region5: #{tpu_custom_call.1} parent=1 // loop_body
      %s20 = ssub.s32 %s15, 1
      %s21 = ssub.s32 %s15, 2
      %s31 = sadd.s32 1, %s24
      %p32 = scmp.ge.s32.totalorder %s31, 8
      %s33 = scalar_select %p32, 0, %s31
      %s34 = sadd.s32 1, %s23
      %s35 = scalar_select %p32, %s34, %s23
      %p36 = scmp.ge.s32.totalorder %s35, 1
      %s37 = scalar_select %p36, 0, %s35
      %s38 = sadd.s32 1, %s22
      %s39 = scalar_select %p36, %s38, %s22
      %p40 = scmp.ge.s32.totalorder %s39, 1
      %s41 = scalar_select %p40, 0, %s39
      %s42 = ssub.s32 %s24, %s33
      %s43 = ssub.s32 %s22, %s41
      %s44 = sor.u32 %s42, %s43
      %p45 = scmp.eq.s32.totalorder %s44, 0
      %s47 = sadd.s32 %s46, 1
      %s48 = scalar_select %p45, %s46, %s47
      %p51 = pneg %p45
      %p52 = scmp.eq.s32.totalorder %s15, 7
      %p53 = por %p51, %p52
      %p54 = scmp.ne.s32.totalorder %s46, %s49
      %p55 = scmp.eq.s32.totalorder %s15, 0
      %p56 = por %p54, %p55
      %p57 = scmp.ne.s32.totalorder %s46, %s49
      %p58 = scmp.eq.s32.totalorder %s20, 7
      %p59 = por %p57, %p58
      %p60 = scmp.ne.s32.totalorder %s49, %s50
      %p61 = scmp.eq.s32.totalorder %s20, 0
      %p62 = por %p60, %p61
      %p63 = scmp.ne.s32.totalorder %s49, %s50
      %p64 = scmp.eq.s32.totalorder %s21, 7
      %p65 = por %p63, %p64
      %p67 = scmp.ne.s32.totalorder %s50, %s66
      %p68 = scmp.eq.s32.totalorder %s21, 0
      %p69 = por %p67, %p68
      %s71 = sadd.s32 %s70, 1
      %p74 = scmp.eq.s32.totalorder %s15, 7
      %p75 = scmp.ne.s32.totalorder %s70, %s72
      %p76 = scmp.eq.s32.totalorder %s15, 0
      %p77 = por %p75, %p76
      %p78 = scmp.ne.s32.totalorder %s70, %s72
      %p79 = scmp.eq.s32.totalorder %s20, 7
      %p80 = por %p78, %p79
      %p81 = scmp.ne.s32.totalorder %s72, %s73
      %p82 = scmp.eq.s32.totalorder %s20, 0
      %p83 = por %p81, %p82
      %p84 = scmp.ne.s32.totalorder %s72, %s73
      %p85 = scmp.eq.s32.totalorder %s21, 7
      %p86 = por %p84, %p85
      %p88 = scmp.ne.s32.totalorder %s73, %s87
      %p89 = scmp.eq.s32.totalorder %s21, 0
      %p90 = por %p88, %p89
      %s92 = sadd.s32 %s91, 1
      %p95 = scmp.eq.s32.totalorder %s15, 7
      %p96 = scmp.ne.s32.totalorder %s91, %s93
      %p97 = scmp.eq.s32.totalorder %s15, 0
      %p98 = por %p96, %p97
      %p99 = scmp.ne.s32.totalorder %s91, %s93
      %p100 = scmp.eq.s32.totalorder %s20, 7
      %p101 = por %p99, %p100
      %p102 = scmp.ne.s32.totalorder %s93, %s94
      %p103 = scmp.eq.s32.totalorder %s20, 0
      %p104 = por %p102, %p103
      %p105 = scmp.ne.s32.totalorder %s93, %s94
      %p106 = scmp.eq.s32.totalorder %s21, 7
      %p107 = por %p105, %p106
      %p109 = scmp.ne.s32.totalorder %s94, %s108
      %p110 = scmp.eq.s32.totalorder %s21, 0
      %p111 = por %p109, %p110
      %s112 = ssub.s32 %s24, %s33
      %s113 = ssub.s32 %s23, %s37
      %s114 = sor.u32 %s112, %s113
      %p115 = scmp.eq.s32.totalorder %s114, 0
      %s117 = sadd.s32 %s116, 1
      %s118 = scalar_select %p115, %s116, %s117
      %p121 = pneg %p115
      %p122 = scmp.eq.s32.totalorder %s15, 7
      %p123 = por %p121, %p122
      %p124 = scmp.ne.s32.totalorder %s116, %s119
      %p125 = scmp.eq.s32.totalorder %s15, 0
      %p126 = por %p124, %p125
      %p127 = scmp.ne.s32.totalorder %s116, %s119
      %p128 = scmp.eq.s32.totalorder %s20, 7
      %p129 = por %p127, %p128
      %p130 = scmp.ne.s32.totalorder %s119, %s120
      %p131 = scmp.eq.s32.totalorder %s20, 0
      %p132 = por %p130, %p131
      %p133 = scmp.ne.s32.totalorder %s119, %s120
      %p134 = scmp.eq.s32.totalorder %s21, 7
      %p135 = por %p133, %p134
      %p137 = scmp.ne.s32.totalorder %s120, %s136
      %p138 = scmp.eq.s32.totalorder %s21, 0
      %p139 = por %p137, %p138
      %s140 = ssub.s32 %s23, %s37
      %p141 = scmp.eq.s32.totalorder %s140, 0
      %s143 = sadd.s32 %s142, 1
      %s144 = scalar_select %p141, %s142, %s143
      %p147 = pneg %p141
      %p148 = scmp.eq.s32.totalorder %s15, 7
      %p149 = por %p147, %p148
      %p150 = scmp.ne.s32.totalorder %s142, %s145
      %p151 = scmp.eq.s32.totalorder %s15, 0
      %p152 = por %p150, %p151
      %p153 = scmp.ne.s32.totalorder %s142, %s145
      %p154 = scmp.eq.s32.totalorder %s20, 7
      %p155 = por %p153, %p154
      %p156 = scmp.ne.s32.totalorder %s145, %s146
      %p157 = scmp.eq.s32.totalorder %s20, 0
      %p158 = por %p156, %p157
      %p159 = scmp.ne.s32.totalorder %s145, %s146
      %p160 = scmp.eq.s32.totalorder %s21, 7
      %p161 = por %p159, %p160
      %p163 = scmp.ne.s32.totalorder %s146, %s162
      %p164 = scmp.eq.s32.totalorder %s21, 0
      %p165 = por %p163, %p164
      %s166 = ssub.s32 %s22, %s41
      %s167 = ssub.s32 %s23, %s37
      %s168 = sor.u32 %s166, %s167
      %p169 = scmp.eq.s32.totalorder %s168, 0
      %s171 = sadd.s32 %s170, 1
      %s172 = scalar_select %p169, %s170, %s171
      %p175 = pneg %p169
      %p176 = scmp.eq.s32.totalorder %s15, 7
      %p177 = por %p175, %p176
      %p178 = scmp.ne.s32.totalorder %s170, %s173
      %p179 = scmp.eq.s32.totalorder %s15, 0
      %p180 = por %p178, %p179
      %p181 = scmp.ne.s32.totalorder %s170, %s173
      %p182 = scmp.eq.s32.totalorder %s20, 7
      %p183 = por %p181, %p182
      %p184 = scmp.ne.s32.totalorder %s173, %s174
      %p185 = scmp.eq.s32.totalorder %s20, 0
      %p186 = por %p184, %p185
      %p187 = scmp.ne.s32.totalorder %s173, %s174
      %p188 = scmp.eq.s32.totalorder %s21, 7
      %p189 = por %p187, %p188
      %p191 = scmp.ne.s32.totalorder %s174, %s190
      %p192 = scmp.eq.s32.totalorder %s21, 0
      %p193 = por %p191, %p192
      %p194 = scmp.le.s32.totalorder 1, %s15
      %p195 = scmp.lt.s32.totalorder %s15, 9
      %p196 = pnand %p194, %p195
      %p197 = pneg %p196
      // Predicated region
      $region9: #{tpu_custom_call.1} parent=5 // pred_check
        _
      $region10: #{tpu_custom_call.1} parent=5 // pred_check_branch
        %199 = sbr.rel (%p196) target = $region12
      $region11: #{tpu_custom_call.1} parent=5 // pred_region
        %s200 = ssub.s32 %s15, 1
        // Predicated region
        $region13: #{tpu_custom_call.1} parent=11 // pred_check
          %p201 = pneg %p83
        $region14: #{tpu_custom_call.1} parent=11 // pred_check_branch
          %203 = sbr.rel (%p201) target = $region16
        $region15: #{tpu_custom_call.1} parent=11 // pred_region
          _
        $region16: #{tpu_custom_call.1} parent=11 // pred_fallthru
          _
        // Predicated region
        $region17: #{tpu_custom_call.1} parent=11 // pred_check
          %p204 = pneg %p104
        $region18: #{tpu_custom_call.1} parent=11 // pred_check_branch
          %206 = sbr.rel (%p204) target = $region20
        $region19: #{tpu_custom_call.1} parent=11 // pred_region
          _
        $region20: #{tpu_custom_call.1} parent=11 // pred_fallthru
          _
        // Predicated region
        $region21: #{tpu_custom_call.1} parent=11 // pred_check
          %p207 = pneg %p158
        $region22: #{tpu_custom_call.1} parent=11 // pred_check_branch
          %209 = sbr.rel (%p207) target = $region24
        $region23: #{tpu_custom_call.1} parent=11 // pred_region
          %p210 = scmp.lt.s32.totalorder %s26, 0
          %s211 = scalar_select %p210, %s26, 0
          %s212 = scalar_lea.vmem %s4, %s211
        $region24: #{tpu_custom_call.1} parent=11 // pred_fallthru
          _
      $region12: #{tpu_custom_call.1} parent=5 // pred_fallthru
        _
      %p213 = scmp.lt.s32.totalorder %s15, 8
      // Predicated region
      $region25: #{tpu_custom_call.1} parent=5 // pred_check
        %p214 = pneg %p213
      $region26: #{tpu_custom_call.1} parent=5 // pred_check_branch
        %216 = sbr.rel (%p214) target = $region28
      $region27: #{tpu_custom_call.1} parent=5 // pred_region
        // Predicated region
        $region29: #{tpu_custom_call.1} parent=27 // pred_check
          %p217 = pneg %p56
        $region30: #{tpu_custom_call.1} parent=27 // pred_check_branch
          %219 = sbr.rel (%p217) target = $region32
        $region31: #{tpu_custom_call.1} parent=27 // pred_region
          %p220 = scmp.lt.s32.totalorder %s24, 7
          %s221 = scalar_select %p220, %s24, 7
          %p222 = scmp.lt.s32.totalorder %s22, 0
          %s223 = scalar_select %p222, %s22, 0
          %s224 = sadd.s32 %s223, %s221
          %s225 = smul.addr %s224, 8
          %s226 = scalar_lea.vmem %s0, %s225
        $region32: #{tpu_custom_call.1} parent=27 // pred_fallthru
          _
        // Predicated region
        $region33: #{tpu_custom_call.1} parent=27 // pred_check
          %p227 = pneg %p126
        $region34: #{tpu_custom_call.1} parent=27 // pred_check_branch
          %229 = sbr.rel (%p227) target = $region36
        $region35: #{tpu_custom_call.1} parent=27 // pred_region
          %s230 = sand.u32 %s116, 1
          %s231 = scalar_lea.sflag [#allocation4], %s230
          %s232 = sand.u32 %s116, 1
          %s233 = smul.addr %s232, 32
          %s234 = scalar_lea.vmem [#allocation3], %s233
          %s236 = ssub.s32 512, 512
          %237 = vsyncadd %s231, %s236
          %s238 = smul.addr %s24, 4
          %s239 = sadd.s32 %s23, %s238
          %s240 = smul.addr %s239, 128
          %s241 = scalar_lea.hbm %s3, %s240
          %s242 = sshll.u32 %s234, 4
          %s243 = int_to_ptr.vmem [resolvable:$true] %s242
          %248 = dma.hbm_to_vmem [thread:$0]  %s241, 512, %s243, %s231, 128, 128, 8
        $region36: #{tpu_custom_call.1} parent=27 // pred_fallthru
          _
      $region28: #{tpu_custom_call.1} parent=5 // pred_fallthru
        _
      %p249 = scmp.le.s32.totalorder 1, %s15
      %p250 = scmp.lt.s32.totalorder %s15, 9
      %p251 = pnand %p249, %p250
      %p252 = pneg %p251
      // Predicated region
      $region37: #{tpu_custom_call.1} parent=5 // pred_check
        _
      $region38: #{tpu_custom_call.1} parent=5 // pred_check_branch
        %254 = sbr.rel (%p251) target = $region40
      $region39: #{tpu_custom_call.1} parent=5 // pred_region
        %s255 = ssub.s32 %s15, 1
        %s256 = sand.u32 %s119, 1
        %s257 = scalar_lea.sflag [#allocation4], %s256
        %s258 = sand.u32 %s119, 1
        %s259 = smul.addr %s258, 32
        %s260 = scalar_lea.vmem [#allocation3], %s259
        // Predicated region
        $region41: #{tpu_custom_call.1} parent=39 // pred_check
          %p261 = pneg %p132
        $region42: #{tpu_custom_call.1} parent=39 // pred_check_branch
          %263 = sbr.rel (%p261) target = $region44
        $region43: #{tpu_custom_call.1} parent=39 // pred_region
          %264 = dma.done %s257, 512
        $region44: #{tpu_custom_call.1} parent=39 // pred_fallthru
          _
        %p265 = scmp.lt.s32.totalorder %s27, 7
        %s266 = scalar_select %p265, %s27, 7
        %p267 = scmp.lt.s32.totalorder %s25, 0
        %s268 = scalar_select %p267, %s25, 0
        %s269 = sadd.s32 %s268, %s266
        %s270 = smul.addr %s269, 8
        %s271 = scalar_lea.vmem %s0, %s270
        %p272 = pneg %p62
        %p273 = pneg %p59
        %p274 = pneg %p83
        %p275 = pneg %p80
        %p276 = pneg %p104
        %p277 = pneg %p101
        %s278 = sand.u32 %s119, 1
        %s279 = scalar_lea.sflag [#allocation4], %s278
        %s280 = sand.u32 %s119, 1
        %s281 = smul.addr %s280, 32
        %s282 = scalar_lea.vmem [#allocation3], %s281
        %p283 = pneg %p132
        %p284 = pneg %p129
        %p285 = scmp.lt.s32.totalorder %s26, 0
        %s286 = scalar_select %p285, %s26, 0
        %s287 = scalar_lea.vmem %s4, %s286
        %p288 = pneg %p158
        %p289 = pneg %p155
        %p290 = pneg %p186
        %p291 = pneg %p183
        %p292 = scmp.lt.s32.totalorder %s27, 7
        %s293 = scalar_select %p292, %s27, 7
        %p294 = scmp.lt.s32.totalorder %s25, 0
        %s295 = scalar_select %p294, %s25, 0
        %s296 = sadd.s32 %s295, %s293
        %s297 = smul.addr %s296, 8
        %s298 = scalar_lea.vmem %s0, %s297
        %p299 = scmp.lt.s32.totalorder %s26, 0
        %s300 = scalar_select %p299, %s26, 0
        %s301 = scalar_lea.vmem %s4, %s300
        %p302 = scmp.eq.s32.totalorder %s27, 0
        // Predicated region
        $region45: #{tpu_custom_call.1} parent=39 // pred_check
          %p303 = pneg %p302
        $region46: #{tpu_custom_call.1} parent=39 // pred_check_branch
          %305 = sbr.rel (%p303) target = $region48
        $region47: #{tpu_custom_call.1} parent=39 // pred_region
          %v306 = vld [vmem:[%s301] sm:$0x1]
          %v308 = vlaneseq
          %v309 = vshrl.u32 %v308, 7
          %v310 = vsub.s32 0, %v309
          %v311 = vrot.slane %v306, %v310
          %313 = vst [vmem:[#allocation2] sm:$0xff] %v311
        $region48: #{tpu_custom_call.1} parent=39 // pred_fallthru
          _
        %v314 = vld [vmem:[%s298] sm:$0xff]
        %v315 = vld [vmem:[%s1] sm:$0xff]
        %v316 = vld [vmem:[%s1 + $0x8] sm:$0xff]
        %v317 = vld [vmem:[%s1 + $0x10] sm:$0xff]
        %v318 = vld [vmem:[%s1 + $0x18] sm:$0xff]
        %v319 = vld [vmem:[%s1 + $0x20] sm:$0xff]
        %v320 = vld [vmem:[%s1 + $0x28] sm:$0xff]
        %v321 = vld [vmem:[%s1 + $0x30] sm:$0xff]
        %v322 = vld [vmem:[%s1 + $0x38] sm:$0xff]
        %v323 = vld [vmem:[%s2] sm:$0x1]
        %v325 = vlaneseq
        %v326 = vshrl.u32 %v325, 7
        %v327 = vsub.s32 0, %v326
        %v328 = vrot.slane %v323, %v327
        %vm330 = vcmask 523264
        %v332 = vsel %vm330, %v314, 0
        %334 = vmatprep.subr.mxu0 0.0
        %335 = vmatpush1.msra.mxu0 %v315
        %336 = vmatprep.subr.mxu0 0.0
        %337 = vmatpush1.msra.mxu0 %v316
        %338 = vmatprep.subr.mxu0 0.0
        %339 = vmatpush1.msra.mxu0 %v317
        %340 = vmatprep.subr.mxu0 0.0
        %341 = vmatpush1.msra.mxu0 %v318
        %342 = vmatprep.subr.mxu0 0.0
        %343 = vmatpush1.msra.mxu0 %v319
        %344 = vmatprep.subr.mxu0 0.0
        %345 = vmatpush1.msra.mxu0 %v320
        %346 = vmatprep.subr.mxu0 0.0
        %347 = vmatpush1.msra.mxu0 %v321
        %348 = vmatprep.subr.mxu0 0.0
        %349 = vmatpush1.msra.mxu0 %v322
        %350 = vmatprep.subr.mxu0 0.0
        %351 = vmatpush1.msra.mxu0 0.0
        %352 = vmatprep.subr.mxu0 0.0
        %353 = vmatpush1.msra.mxu0 0.0
        %354 = vmatprep.subr.mxu0 0.0
        %355 = vmatpush1.msra.mxu0 0.0
        %356 = vmatprep.subr.mxu0 0.0
        %357 = vmatpush1.msra.mxu0 0.0
        %358 = vmatprep.subr.mxu0 0.0
        %359 = vmatpush1.msra.mxu0 0.0
        %360 = vmatprep.subr.mxu0 0.0
        %361 = vmatpush1.msra.mxu0 0.0
        %362 = vmatprep.subr.mxu0 0.0
        %363 = vmatpush1.msra.mxu0 0.0
        %364 = vmatprep.subr.mxu0 0.0
        %365 = vmatpush1.msra.mxu0 0.0
        %366 = vmatprep.subr.mxu0 0.0
        %367 = vmatpush1.msra.mxu0 0.0
        %368 = vmatprep.subr.mxu0 0.0
        %369 = vmatpush1.msra.mxu0 0.0
        %370 = vmatprep.subr.mxu0 0.0
        %371 = vmatpush1.msra.mxu0 0.0
        %372 = vmatprep.subr.mxu0 0.0
        %373 = vmatpush1.msra.mxu0 0.0
        %374 = vmatprep.subr.mxu0 0.0
        %375 = vmatpush1.msra.mxu0 0.0
        %376 = vmatprep.subr.mxu0 0.0
        %377 = vmatpush1.msra.mxu0 0.0
        %378 = vmatprep.subr.mxu0 0.0
        %379 = vmatpush1.msra.mxu0 0.0
        %380 = vmatprep.subr.mxu0 0.0
        %381 = vmatpush1.msra.mxu0 0.0
        %382 = vmatprep.subr.mxu0 0.0
        %383 = vmatpush1.msra.mxu0 0.0
        %384 = vmatprep.subr.mxu0 0.0
        %385 = vmatpush1.msra.mxu0 0.0
        %386 = vmatprep.subr.mxu0 0.0
        %387 = vmatpush1.msra.mxu0 0.0
        %388 = vmatprep.subr.mxu0 0.0
        %389 = vmatpush1.msra.mxu0 0.0
        %390 = vmatprep.subr.mxu0 0.0
        %391 = vmatpush1.msra.mxu0 0.0
        %392 = vmatprep.subr.mxu0 0.0
        %393 = vmatpush1.msra.mxu0 0.0
        %394 = vmatprep.subr.mxu0 0.0
        %395 = vmatpush1.msra.mxu0 0.0
        %396 = vmatprep.subr.mxu0 0.0
        %397 = vmatpush1.msra.mxu0 0.0
        %398 = vmatprep.mubr.f32.mxu0 0.0
        %399 = vmatmul.mubr.f32.gmra.mrb[0].mxu0 %v332
        %v400 = vpop.f32.mrb[0].mxu0
        %v401 = vadd.f32 %v328, %v400
        %v402 = vpop.f32.mrb[0].mxu0
        %403 = vdwg.mxu0
        %v404 = vld [vmem:[#allocation2] sm:$0xff]
        %v405 = vld [vmem:[%s260] sm:$0xff]
        %v406 = vld [vmem:[%s260 + $0x8] sm:$0xff]
        %v407 = vld [vmem:[%s260 + $0x10] sm:$0xff]
        %v408 = vld [vmem:[%s260 + $0x18] sm:$0xff]
        %vm409 = vcmask 261120
        %v411 = vsel %vm409, %v401, 0
        %413 = vmatprep.subr.mxu0 0.0
        %414 = vmatpush1.msra.mxu0 %v405
        %415 = vmatprep.subr.mxu0 0.0
        %416 = vmatpush1.msra.mxu0 %v406
        %417 = vmatprep.subr.mxu0 0.0
        %418 = vmatpush1.msra.mxu0 %v407
        %419 = vmatprep.subr.mxu0 0.0
        %420 = vmatpush1.msra.mxu0 %v408
        %421 = vmatprep.subr.mxu0 0.0
        %422 = vmatpush1.msra.mxu0 0.0
        %423 = vmatprep.subr.mxu0 0.0
        %424 = vmatpush1.msra.mxu0 0.0
        %425 = vmatprep.subr.mxu0 0.0
        %426 = vmatpush1.msra.mxu0 0.0
        %427 = vmatprep.subr.mxu0 0.0
        %428 = vmatpush1.msra.mxu0 0.0
        %429 = vmatprep.subr.mxu0 0.0
        %430 = vmatpush1.msra.mxu0 0.0
        %431 = vmatprep.subr.mxu0 0.0
        %432 = vmatpush1.msra.mxu0 0.0
        %433 = vmatprep.subr.mxu0 0.0
        %434 = vmatpush1.msra.mxu0 0.0
        %435 = vmatprep.subr.mxu0 0.0
        %436 = vmatpush1.msra.mxu0 0.0
        %437 = vmatprep.subr.mxu0 0.0
        %438 = vmatpush1.msra.mxu0 0.0
        %439 = vmatprep.subr.mxu0 0.0
        %440 = vmatpush1.msra.mxu0 0.0
        %441 = vmatprep.subr.mxu0 0.0
        %442 = vmatpush1.msra.mxu0 0.0
        %443 = vmatprep.subr.mxu0 0.0
        %444 = vmatpush1.msra.mxu0 0.0
        %445 = vmatprep.subr.mxu0 0.0
        %446 = vmatpush1.msra.mxu0 0.0
        %447 = vmatprep.subr.mxu0 0.0
        %448 = vmatpush1.msra.mxu0 0.0
        %449 = vmatprep.subr.mxu0 0.0
        %450 = vmatpush1.msra.mxu0 0.0
        %451 = vmatprep.subr.mxu0 0.0
        %452 = vmatpush1.msra.mxu0 0.0
        %453 = vmatprep.subr.mxu0 0.0
        %454 = vmatpush1.msra.mxu0 0.0
        %455 = vmatprep.subr.mxu0 0.0
        %456 = vmatpush1.msra.mxu0 0.0
        %457 = vmatprep.subr.mxu0 0.0
        %458 = vmatpush1.msra.mxu0 0.0
        %459 = vmatprep.subr.mxu0 0.0
        %460 = vmatpush1.msra.mxu0 0.0
        %461 = vmatprep.subr.mxu0 0.0
        %462 = vmatpush1.msra.mxu0 0.0
        %463 = vmatprep.subr.mxu0 0.0
        %464 = vmatpush1.msra.mxu0 0.0
        %465 = vmatprep.subr.mxu0 0.0
        %466 = vmatpush1.msra.mxu0 0.0
        %467 = vmatprep.subr.mxu0 0.0
        %468 = vmatpush1.msra.mxu0 0.0
        %469 = vmatprep.subr.mxu0 0.0
        %470 = vmatpush1.msra.mxu0 0.0
        %471 = vmatprep.subr.mxu0 0.0
        %472 = vmatpush1.msra.mxu0 0.0
        %473 = vmatprep.subr.mxu0 0.0
        %474 = vmatpush1.msra.mxu0 0.0
        %475 = vmatprep.subr.mxu0 0.0
        %476 = vmatpush1.msra.mxu0 0.0
        %477 = vmatprep.mubr.f32.mxu0 0.0
        %478 = vmatmul.mubr.f32.gmra.mrb[0].mxu0 %v411
        %v479 = vpop.f32.mrb[0].mxu0
        %v480 = vadd.f32 0.0, %v479
        %v481 = vpop.f32.mrb[0].mxu0
        %482 = vdwg.mxu0
        %v483 = vadd.f32 %v404, %v480
        %484 = vst [vmem:[#allocation2] sm:$0xff] %v483
        %p485 = scmp.eq.s32.totalorder %s27, 7
        // Predicated region
        $region49: #{tpu_custom_call.1} parent=39 // pred_check
          %p486 = pneg %p485
        $region50: #{tpu_custom_call.1} parent=39 // pred_check_branch
          %488 = sbr.rel (%p486) target = $region52
        $region51: #{tpu_custom_call.1} parent=39 // pred_region
          %v489 = vld [vmem:[#allocation2] sm:$0xff]
          %490 = vst [vmem:[#allocation6] sm:$0xff] %v489
        $region52: #{tpu_custom_call.1} parent=39 // pred_fallthru
          _
        // Predicated region
        $region53: #{tpu_custom_call.1} parent=39 // pred_check
          %p491 = pneg %p183
        $region54: #{tpu_custom_call.1} parent=39 // pred_check_branch
          %493 = sbr.rel (%p491) target = $region56
        $region55: #{tpu_custom_call.1} parent=39 // pred_region
          %s495 = ssub.s32 128, 128
          %496 = vsyncadd [#allocation5], %s495
          %s497 = sadd.s32 %s26, %s25
          %s498 = smul.addr %s497, 128
          %s499 = scalar_lea.hbm %s5, %s498
          %s501 = sshll.u32 [#allocation6], 4
          %s502 = int_to_ptr.vmem [resolvable:$true] %s501
          %504 = dma.vmem_to_hbm [thread:$0]  %s502, 128, %s499, [#allocation5]
        $region56: #{tpu_custom_call.1} parent=39 // pred_fallthru
          _
        // Predicated region
        $region57: #{tpu_custom_call.1} parent=39 // pred_check
          %p505 = pneg %p183
        $region58: #{tpu_custom_call.1} parent=39 // pred_check_branch
          %507 = sbr.rel (%p505) target = $region60
        $region59: #{tpu_custom_call.1} parent=39 // pred_region
          %508 = dma.done [#allocation5], 128
        $region60: #{tpu_custom_call.1} parent=39 // pred_fallthru
          _
      $region40: #{tpu_custom_call.1} parent=5 // pred_fallthru
        _
      %p509 = scmp.le.s32.totalorder 2, %s15
      // Predicated region
      $region61: #{tpu_custom_call.1} parent=5 // pred_check
        %p510 = pneg %p509
      $region62: #{tpu_custom_call.1} parent=5 // pred_check_branch
        %512 = sbr.rel (%p510) target = $region64
      $region63: #{tpu_custom_call.1} parent=5 // pred_region
        %s513 = ssub.s32 %s15, 2
      $region64: #{tpu_custom_call.1} parent=5 // pred_fallthru
        _
    $region6: #{tpu_custom_call.1} parent=1 // loop_footer
      %s19 = sadd.s32 1, %s15
    $region7: #{tpu_custom_call.1} parent=1 // loop_footer_branch
      %14 = sbr.rel target = $region3
    $region8: #{tpu_custom_call.1} parent=1 // loop_exit
      _
    %514 = vsyncpa [#allocation4], 1
    %s515 = scalar_lea.sflag [#allocation4], 1
    %516 = vsyncpa %s515, 1
    %517 = vsyncpa [#allocation5], 1
    %s518 = scalar_lea.sflag [#allocation5], 1
    %519 = vsyncpa %s518, 1

</llo_original>
